<compile_context>
chip_gen: v7x
topology: tpu7x:2x2x1
jax: 0.10.0
libtpu: 0.0.40
codegen_flags: <defaults>
</compile_context>

<pallas_src>
import math

import jax
import jax.numpy as jnp
from jax.experimental import pallas as pl
from jax.experimental.pallas import tpu as pltpu

_LANES = 128


def _nan_to_num(x):
    """Match torch.nan_to_num(x, nan=0.0, posinf=1.0, neginf=-1.0)."""
    x = jnp.where(jnp.isnan(x), jnp.zeros_like(x), x)
    x = jnp.where(jnp.isposinf(x), jnp.full_like(x, 1.0), x)
    x = jnp.where(jnp.isneginf(x), jnp.full_like(x, -1.0), x)
    return x


def build_pe_table(d_model, max_len=5000, dtype=jnp.float32):
    """Deterministic sin/cos positional-encoding table, shape [max_len, d_model]."""
    position = jnp.arange(max_len, dtype=jnp.float32)[:, None]                 # [L, 1]
    div_term = jnp.exp(jnp.arange(0, d_model, 2, dtype=jnp.float32)
                       * (-math.log(10000.0) / d_model))                       # [D/2]
    sin = jnp.sin(position * div_term)                                         # [L, D/2]
    cos = jnp.cos(position * div_term)                                         # [L, D/2]
    pe = jnp.stack([sin, cos], axis=-1).reshape(max_len, d_model)              # interleave
    return pe.astype(dtype)


def _pos_enc_eval_kernel(x_ref, pe_ref, o_ref):
    # x_ref block: (1, TR, 128)   pe_ref block: (TR, 128)
    x = _nan_to_num(x_ref[...].astype(jnp.float32))
    x = x + pe_ref[...][None, :, :]
    x = _nan_to_num(x)
    o_ref[...] = x.astype(o_ref.dtype)


def _pos_enc_train_kernel(x_ref, pe_ref, scale_ref, o_ref):
    # scale_ref block: (1, TR, 128) -- inverted-dropout scale: keep/(1-p) or 0
    x = _nan_to_num(x_ref[...].astype(jnp.float32))
    x = x + pe_ref[...][None, :, :]
    x = x * scale_ref[...]
    x = _nan_to_num(x)
    o_ref[...] = x.astype(o_ref.dtype)


def _round_up(a, m):
    return ((a + m - 1) // m) * m


def positional_encoding(x, pe_table, *, p=0.1, training=False, rng_key=None,
                        row_tile=1024):
    """
    Args:
      x:        [B, S, D] float array
      pe_table: [max_len, D] positional table (S <= max_len)
      row_tile: rows of 128 lanes per tile (~512 KiB f32 at 1024) -- sized to stay well
                inside default scoped VMEM on v5e/v6e/v7x with double-buffered in+out.
    Returns:
      [B, S, D] array, same dtype as x.
    """
    B, S, D = x.shape
    N = S * D

    # Lane-dense flattening: (B, S, D) -> (B, R, 128), padded so tiles divide evenly.
    R = pl.cdiv(N, _LANES)
    TR = min(int(row_tile), R)
    if TR < R:                       # interior tiles must keep the sublane dim a mult. of 8
        TR = max(8, (TR // 8) * 8)
    Rpad = _round_up(R, TR)
    Npad = Rpad * _LANES

    pe_flat = pe_table[:S, :D].astype(jnp.float32).reshape(N)
    pe_flat = jnp.pad(pe_flat, (0, Npad - N)).reshape(Rpad, _LANES)
    xf = jnp.pad(x.reshape(B, N), ((0, 0), (0, Npad - N))).reshape(B, Rpad, _LANES)

    grid = (B, Rpad // TR)
    row_spec = pl.BlockSpec((1, TR, _LANES), lambda b, t: (b, t, 0))
    pe_spec = pl.BlockSpec((TR, _LANES), lambda b, t: (t, 0))
    out_shape = jax.ShapeDtypeStruct((B, Rpad, _LANES), x.dtype)
    cparams = pltpu.CompilerParams(dimension_semantics=("parallel", "parallel"))

    if training and p > 0.0:
        # Dropout mask is generated host-side (glue) and streamed into the kernel;
        # this keeps the kernel portable (no stateful TPU PRNG in the interpret path).
        if rng_key is None:
            rng_key = jax.random.PRNGKey(0)
        keep = jax.random.bernoulli(rng_key, 1.0 - p, (B, Rpad, _LANES))
        scale = keep.astype(jnp.float32) * jnp.float32(1.0 / (1.0 - p))
        out = pl.pallas_call(
            _pos_enc_train_kernel,
            out_shape=out_shape,
            grid=grid,
            in_specs=[row_spec, pe_spec, row_spec],
            out_specs=row_spec,
            compiler_params=cparams,
        )(xf, pe_flat, scale)
    else:
        out = pl.pallas_call(
            _pos_enc_eval_kernel,
            out_shape=out_shape,
            grid=grid,
            in_specs=[row_spec, pe_spec],
            out_specs=row_spec,
            compiler_params=cparams,
        )(xf, pe_flat)

    return out.reshape(B, Npad)[:, :N].reshape(B, S, D)


if __name__ == "__main__":
    key = jax.random.PRNGKey(0)
    k1, k2, k3 = jax.random.split(key, 3)

    # Small shape consistent with the module: [batch, seq_len, d_model]
    B, S, D = 2, 8, 32
    x = jax.random.normal(k1, (B, S, D), dtype=jnp.float32)
    # exercise the nan/inf sanitization path
    x = x.at[0, 0, 0].set(jnp.nan)
    x = x.at[1, 2, 3].set(jnp.inf)
    x = x.at[1, 3, 5].set(-jnp.inf)
    pe_table = build_pe_table(D, max_len=5000)

    # eval-mode forward (dropout = identity) -- deterministic, matches torch eval()
    out = jax.block_until_ready(positional_encoding(x, pe_table, p=0.1, training=False))
    ref = _nan_to_num(_nan_to_num(x.astype(jnp.float32)) + pe_table[None, :S, :])
    assert jnp.allclose(out, ref, atol=1e-6), "eval mismatch vs reference"

    # second case exercises the multi-tile (batch, seq-tile) grid path
    B2, S2, D2 = 2, 128, 256
    x2 = jax.random.normal(k2, (B2, S2, D2), dtype=jnp.float32)
    pe_table2 = build_pe_table(D2, max_len=512)
    out2 = jax.block_until_ready(
        positional_encoding(x2, pe_table2, p=0.1, training=False, row_tile=64))
    ref2 = _nan_to_num(_nan_to_num(x2) + pe_table2[None, :S2, :])
    assert jnp.allclose(out2, ref2, atol=1e-6), "tiled eval mismatch vs reference"

    # training-mode forward (inverted dropout applied in-kernel) -- run to completion
    out_train = jax.block_until_ready(
        positional_encoding(x, pe_table, p=0.1, training=True, rng_key=k3))
    assert bool(jnp.isfinite(out_train).all()), "training output not finite"

    print("KERNEL_OK")
</pallas_src>

<mosaic_0001>
module attributes {stable_mosaic.version = 11 : i64} {
  func.func @_pos_enc_eval_kernel(%arg0: i32, %arg1: i32, %arg2: memref<1x2x128xf32, #tpu.memory_space<vmem>>, %arg3: memref<2x128xf32, #tpu.memory_space<vmem>>, %arg4: memref<1x2x128xf32, #tpu.memory_space<vmem>>) attributes {dimension_semantics = [#tpu.dimension_semantics<parallel>, #tpu.dimension_semantics<parallel>], iteration_bounds = array<i64: 2, 1>, scalar_prefetch = 0 : i64, scratch_operands = 0 : i64, tpu.core_type = #tpu.core_type<tc>, window_params = [{transform_indices = @transform_0, window_bounds = array<i64: 1, 2, 128>}, {transform_indices = @transform_1, window_bounds = array<i64: 2, 128>}, {transform_indices = @transform_2, window_bounds = array<i64: 1, 2, 128>}]} {
    %c0 = arith.constant 0 : index
    %c0_0 = arith.constant 0 : index
    %c0_1 = arith.constant 0 : index
    %0 = vector.load %arg2[%c0, %c0_0, %c0_1] : memref<1x2x128xf32, #tpu.memory_space<vmem>>, vector<1x2x128xf32>
    %1 = arith.cmpf one, %0, %0 : vector<1x2x128xf32>
    %cst = arith.constant 0.000000e+00 : f32
    %2 = vector.broadcast %cst : f32 to vector<1x2x128xf32>
    %3 = arith.select %1, %2, %0 : vector<1x2x128xi1>, vector<1x2x128xf32>
    %cst_2 = arith.constant 0x7F800000 : f32
    %4 = vector.broadcast %cst_2 : f32 to vector<1x2x128xf32>
    %5 = arith.cmpf oeq, %3, %4 : vector<1x2x128xf32>
    %cst_3 = arith.constant 1.000000e+00 : f32
    %6 = vector.broadcast %cst_3 : f32 to vector<1x2x128xf32>
    %7 = arith.select %5, %6, %3 : vector<1x2x128xi1>, vector<1x2x128xf32>
    %cst_4 = arith.constant 0xFF800000 : f32
    %8 = vector.broadcast %cst_4 : f32 to vector<1x2x128xf32>
    %9 = arith.cmpf oeq, %7, %8 : vector<1x2x128xf32>
    %cst_5 = arith.constant -1.000000e+00 : f32
    %10 = vector.broadcast %cst_5 : f32 to vector<1x2x128xf32>
    %11 = arith.select %9, %10, %7 : vector<1x2x128xi1>, vector<1x2x128xf32>
    %c0_6 = arith.constant 0 : index
    %c0_7 = arith.constant 0 : index
    %12 = vector.load %arg3[%c0_6, %c0_7] : memref<2x128xf32, #tpu.memory_space<vmem>>, vector<2x128xf32>
    %13 = vector.shape_cast %12 : vector<2x128xf32> to vector<1x2x128xf32>
    %14 = arith.addf %11, %13 : vector<1x2x128xf32>
    %15 = arith.cmpf one, %14, %14 : vector<1x2x128xf32>
    %cst_8 = arith.constant 0.000000e+00 : f32
    %16 = vector.broadcast %cst_8 : f32 to vector<1x2x128xf32>
    %17 = arith.select %15, %16, %14 : vector<1x2x128xi1>, vector<1x2x128xf32>
    %cst_9 = arith.constant 0x7F800000 : f32
    %18 = vector.broadcast %cst_9 : f32 to vector<1x2x128xf32>
    %19 = arith.cmpf oeq, %17, %18 : vector<1x2x128xf32>
    %cst_10 = arith.constant 1.000000e+00 : f32
    %20 = vector.broadcast %cst_10 : f32 to vector<1x2x128xf32>
    %21 = arith.select %19, %20, %17 : vector<1x2x128xi1>, vector<1x2x128xf32>
    %cst_11 = arith.constant 0xFF800000 : f32
    %22 = vector.broadcast %cst_11 : f32 to vector<1x2x128xf32>
    %23 = arith.cmpf oeq, %21, %22 : vector<1x2x128xf32>
    %cst_12 = arith.constant -1.000000e+00 : f32
    %24 = vector.broadcast %cst_12 : f32 to vector<1x2x128xf32>
    %25 = arith.select %23, %24, %21 : vector<1x2x128xi1>, vector<1x2x128xf32>
    %c0_13 = arith.constant 0 : index
    %c0_14 = arith.constant 0 : index
    %c0_15 = arith.constant 0 : index
    %26 = vector.load %arg4[%c0_13, %c0_14, %c0_15] : memref<1x2x128xf32, #tpu.memory_space<vmem>>, vector<1x2x128xf32>
    tpu.vector_store %arg4[%c0_13, %c0_14, %c0_15], %25 {strides = array<i32>} : memref<1x2x128xf32, #tpu.memory_space<vmem>>, vector<1x2x128xf32>,
    return
  }
  func.func @transform_0(%arg0: i32, %arg1: i32) -> (i32, i32, i32) {
    %c0_i32 = arith.constant 0 : i32
    %c0_i32_0 = arith.constant 0 : i32
    return %arg0, %arg1, %c0_i32 : i32, i32, i32
  }
  func.func @transform_1(%arg0: i32, %arg1: i32) -> (i32, i32) {
    %c0_i32 = arith.constant 0 : i32
    %c0_i32_0 = arith.constant 0 : i32
    return %arg1, %c0_i32 : i32, i32
  }
  func.func @transform_2(%arg0: i32, %arg1: i32) -> (i32, i32, i32) {
    %c0_i32 = arith.constant 0 : i32
    %c0_i32_0 = arith.constant 0 : i32
    return %arg0, %arg1, %c0_i32 : i32, i32, i32
  }
}

</mosaic_0001>

<llo_original>
// kernel: tpu_custom_call.1
$region0: #{tpu_custom_call.1}
  #allocation0 [shape = 'u32[]', space=smem, size = 0x4, offset = 0x4, fixed_abs, tag = 'smem constant byte address 0x4 - core index']
  #allocation1 [shape = 'u32[144,128]{1,0:T(1,128)}', space=vmem, size = 0x12000, scoped, tag = 'internal scratch']
  %s0 = inlined_call_operand.hbm [shape: f32[2,2,128], index: 0, kind: input, shape index: {}]
  %s1 = inlined_call_operand.vmem [shape: f32[2,128], index: 1, kind: input, shape index: {}]
  %s2 = inlined_call_operand.hbm [shape: f32[2,2,128], index: 2, kind: output, shape index: {}]
  %s3 = sld [smem:[#allocation0]]
  $region45: #{tpu_custom_call.1} parent=0
    _
  %s5 = ssub.s32 1, %s3
  %s6 = scalar_select 0, %s5, %s3
  $region1: #{tpu_custom_call.1} parent=0
    #allocation2 [shape = 'u8[2048]{0}', space=vmem, size = 0x800, scoped, tag = 'input window, operand 0']
    #allocation3 [shape = 's32[2]{0}', space=sflag, size = 0x8, scoped, tag = 'scoped memory for tpu_custom_call.1']
    #allocation4 [shape = 's32[2]{0}', space=sflag, size = 0x8, scoped, tag = 'scoped memory for tpu_custom_call.1']
    #allocation5 [shape = 'u8[2048]{0}', space=vmem, size = 0x800, scoped, tag = 'output window, operand 0']
    %7 = vsyncpa [#allocation3], 0
    %s8 = scalar_lea.sflag [#allocation3], 1
    %9 = vsyncpa %s8, 0
    %10 = vsyncpa [#allocation4], 0
    %s11 = scalar_lea.sflag [#allocation4], 1
    %12 = vsyncpa %s11, 0
    loop: start=0, step=1, limit=4
    $region2: #{tpu_custom_call.1} parent=1 // loop_pre_header
      _
    $region3: #{tpu_custom_call.1} parent=1 // loop_header
      %s14 = sphi 0, %s18
      %p15 = scmp.ge.s32.totalorder %s14, 4
      %s21 = sphi 0, %s33
      %s22 = sphi 0, %s29
      %s23 = sphi 0, %s21
      %s24 = sphi 0, %s22
      %s25 = sphi 0, %s23
      %s26 = sphi 0, %s24
      %s38 = sphi 0, %s40
      %s41 = sphi 0, %s38
      %s42 = sphi 0, %s41
      %s58 = sphi 0, %s42
      %s64 = sphi 0, %s66
      %s67 = sphi 0, %s64
      %s68 = sphi 0, %s67
      %s84 = sphi 0, %s68
      %s92 = sphi 0, %s94
      %s95 = sphi 0, %s92
      %s96 = sphi 0, %s95
      %s112 = sphi 0, %s96
    $region4: #{tpu_custom_call.1} parent=1 // loop_header_branch
      %17 = sbr.rel (%p15) target = $region8
    $region5: #{tpu_custom_call.1} parent=1 // loop_body
      %s19 = ssub.s32 %s14, 1
      %s20 = ssub.s32 %s14, 2
      %s27 = sadd.s32 1, %s22
      %p28 = scmp.ge.s32.totalorder %s27, 1
      %s29 = scalar_select %p28, 0, %s27
      %s30 = sadd.s32 1, %s21
      %s31 = scalar_select %p28, %s30, %s21
      %p32 = scmp.ge.s32.totalorder %s31, 2
      %s33 = scalar_select %p32, 0, %s31
      %s34 = ssub.s32 %s21, %s33
      %s35 = ssub.s32 %s22, %s29
      %s36 = sor.u32 %s34, %s35
      %p37 = scmp.eq.s32.totalorder %s36, 0
      %s39 = sadd.s32 %s38, 1
      %s40 = scalar_select %p37, %s38, %s39
      %p43 = pneg %p37
      %p44 = scmp.eq.s32.totalorder %s14, 1
      %p45 = por %p43, %p44
      %p46 = scmp.ne.s32.totalorder %s38, %s41
      %p47 = scmp.eq.s32.totalorder %s14, 0
      %p48 = por %p46, %p47
      %p49 = scmp.ne.s32.totalorder %s38, %s41
      %p50 = scmp.eq.s32.totalorder %s19, 1
      %p51 = por %p49, %p50
      %p52 = scmp.ne.s32.totalorder %s41, %s42
      %p53 = scmp.eq.s32.totalorder %s19, 0
      %p54 = por %p52, %p53
      %p55 = scmp.ne.s32.totalorder %s41, %s42
      %p56 = scmp.eq.s32.totalorder %s20, 1
      %p57 = por %p55, %p56
      %p59 = scmp.ne.s32.totalorder %s42, %s58
      %p60 = scmp.eq.s32.totalorder %s20, 0
      %p61 = por %p59, %p60
      %s62 = ssub.s32 %s22, %s29
      %p63 = scmp.eq.s32.totalorder %s62, 0
      %s65 = sadd.s32 %s64, 1
      %s66 = scalar_select %p63, %s64, %s65
      %p69 = pneg %p63
      %p70 = scmp.eq.s32.totalorder %s14, 1
      %p71 = por %p69, %p70
      %p72 = scmp.ne.s32.totalorder %s64, %s67
      %p73 = scmp.eq.s32.totalorder %s14, 0
      %p74 = por %p72, %p73
      %p75 = scmp.ne.s32.totalorder %s64, %s67
      %p76 = scmp.eq.s32.totalorder %s19, 1
      %p77 = por %p75, %p76
      %p78 = scmp.ne.s32.totalorder %s67, %s68
      %p79 = scmp.eq.s32.totalorder %s19, 0
      %p80 = por %p78, %p79
      %p81 = scmp.ne.s32.totalorder %s67, %s68
      %p82 = scmp.eq.s32.totalorder %s20, 1
      %p83 = por %p81, %p82
      %p85 = scmp.ne.s32.totalorder %s68, %s84
      %p86 = scmp.eq.s32.totalorder %s20, 0
      %p87 = por %p85, %p86
      %s88 = ssub.s32 %s21, %s33
      %s89 = ssub.s32 %s22, %s29
      %s90 = sor.u32 %s88, %s89
      %p91 = scmp.eq.s32.totalorder %s90, 0
      %s93 = sadd.s32 %s92, 1
      %s94 = scalar_select %p91, %s92, %s93
      %p97 = pneg %p91
      %p98 = scmp.eq.s32.totalorder %s14, 1
      %p99 = por %p97, %p98
      %p100 = scmp.ne.s32.totalorder %s92, %s95
      %p101 = scmp.eq.s32.totalorder %s14, 0
      %p102 = por %p100, %p101
      %p103 = scmp.ne.s32.totalorder %s92, %s95
      %p104 = scmp.eq.s32.totalorder %s19, 1
      %p105 = por %p103, %p104
      %p106 = scmp.ne.s32.totalorder %s95, %s96
      %p107 = scmp.eq.s32.totalorder %s19, 0
      %p108 = por %p106, %p107
      %p109 = scmp.ne.s32.totalorder %s95, %s96
      %p110 = scmp.eq.s32.totalorder %s20, 1
      %p111 = por %p109, %p110
      %p113 = scmp.ne.s32.totalorder %s96, %s112
      %p114 = scmp.eq.s32.totalorder %s20, 0
      %p115 = por %p113, %p114
      %p116 = scmp.le.s32.totalorder 1, %s14
      %p117 = scmp.lt.s32.totalorder %s14, 3
      %p118 = pnand %p116, %p117
      %p119 = pneg %p118
      // Predicated region
      $region9: #{tpu_custom_call.1} parent=5 // pred_check
        _
      $region10: #{tpu_custom_call.1} parent=5 // pred_check_branch
        %121 = sbr.rel (%p118) target = $region12
      $region11: #{tpu_custom_call.1} parent=5 // pred_region
        %s122 = ssub.s32 %s14, 1
        // Predicated region
        $region13: #{tpu_custom_call.1} parent=11 // pred_check
          %p123 = pneg %p80
        $region14: #{tpu_custom_call.1} parent=11 // pred_check_branch
          %125 = sbr.rel (%p123) target = $region16
        $region15: #{tpu_custom_call.1} parent=11 // pred_region
          %p126 = scmp.lt.s32.totalorder %s24, 0
          %s127 = scalar_select %p126, %s24, 0
          %s128 = smul.addr %s127, 2
          %s129 = scalar_lea.vmem %s1, %s128
        $region16: #{tpu_custom_call.1} parent=11 // pred_fallthru
          _
      $region12: #{tpu_custom_call.1} parent=5 // pred_fallthru
        _
      %p130 = scmp.lt.s32.totalorder %s14, 2
      // Predicated region
      $region17: #{tpu_custom_call.1} parent=5 // pred_check
        %p131 = pneg %p130
      $region18: #{tpu_custom_call.1} parent=5 // pred_check_branch
        %133 = sbr.rel (%p131) target = $region20
      $region19: #{tpu_custom_call.1} parent=5 // pred_region
        // Predicated region
        $region21: #{tpu_custom_call.1} parent=19 // pred_check
          %p134 = pneg %p48
        $region22: #{tpu_custom_call.1} parent=19 // pred_check_branch
          %136 = sbr.rel (%p134) target = $region24
        $region23: #{tpu_custom_call.1} parent=19 // pred_region
          %s137 = sand.u32 %s38, 1
          %s138 = scalar_lea.sflag [#allocation3], %s137
          %s139 = sand.u32 %s38, 1
          %s140 = smul.addr %s139, 2
          %s141 = scalar_lea.vmem [#allocation2], %s140
          %s143 = ssub.s32 32, 32
          %144 = vsyncadd %s138, %s143
          %s145 = sadd.s32 %s22, %s21
          %s146 = smul.addr %s145, 32
          %s147 = scalar_lea.hbm %s0, %s146
          %s149 = sshll.u32 %s141, 4
          %s150 = int_to_ptr.vmem [resolvable:$true] %s149
          %152 = dma.hbm_to_vmem [thread:$0]  %s147, 32, %s150, %s138
        $region24: #{tpu_custom_call.1} parent=19 // pred_fallthru
          _
      $region20: #{tpu_custom_call.1} parent=5 // pred_fallthru
        _
      %p153 = scmp.le.s32.totalorder 1, %s14
      %p154 = scmp.lt.s32.totalorder %s14, 3
      %p155 = pnand %p153, %p154
      %p156 = pneg %p155
      // Predicated region
      $region25: #{tpu_custom_call.1} parent=5 // pred_check
        _
      $region26: #{tpu_custom_call.1} parent=5 // pred_check_branch
        %158 = sbr.rel (%p155) target = $region28
      $region27: #{tpu_custom_call.1} parent=5 // pred_region
        %s159 = ssub.s32 %s14, 1
        %s160 = sand.u32 %s41, 1
        %s161 = scalar_lea.sflag [#allocation3], %s160
        %s162 = sand.u32 %s41, 1
        %s163 = smul.addr %s162, 2
        %s164 = scalar_lea.vmem [#allocation2], %s163
        // Predicated region
        $region29: #{tpu_custom_call.1} parent=27 // pred_check
          %p165 = pneg %p54
        $region30: #{tpu_custom_call.1} parent=27 // pred_check_branch
          %167 = sbr.rel (%p165) target = $region32
        $region31: #{tpu_custom_call.1} parent=27 // pred_region
          %168 = dma.done %s161, 32
        $region32: #{tpu_custom_call.1} parent=27 // pred_fallthru
          _
        %s169 = sand.u32 %s41, 1
        %s170 = scalar_lea.sflag [#allocation3], %s169
        %s171 = sand.u32 %s41, 1
        %s172 = smul.addr %s171, 2
        %s173 = scalar_lea.vmem [#allocation2], %s172
        %p174 = pneg %p54
        %p175 = pneg %p51
        %p176 = scmp.lt.s32.totalorder %s24, 0
        %s177 = scalar_select %p176, %s24, 0
        %s178 = smul.addr %s177, 2
        %s179 = scalar_lea.vmem %s1, %s178
        %p180 = pneg %p80
        %p181 = pneg %p77
        %p182 = pneg %p108
        %p183 = pneg %p105
        %s184 = sand.u32 %s95, 1
        %s185 = scalar_lea.sflag [#allocation4], %s184
        %s186 = sand.u32 %s95, 1
        %s187 = smul.addr %s186, 2
        %s188 = scalar_lea.vmem [#allocation5], %s187
        %p189 = scmp.lt.s32.totalorder %s24, 0
        %s190 = scalar_select %p189, %s24, 0
        %s191 = smul.addr %s190, 2
        %s192 = scalar_lea.vmem %s1, %s191
        %v193 = vld [vmem:[%s164] sm:$0x3]
        %vm194 = vcmp.ne.f32.partialorder %v193, %v193
        %v195 = vsel %vm194, 0.0, %v193
        %vm196 = vcmp.eq.f32.partialorder %v195, inf
        %v197 = vsel %vm196, 1.0, %v195
        %vm198 = vcmp.eq.f32.partialorder %v197, -inf
        %v199 = vsel %vm198, -1.0, %v197
        %v200 = vld [vmem:[%s192] sm:$0x3]
        %v201 = vadd.f32 %v199, %v200
        %vm202 = vcmp.ne.f32.partialorder %v201, %v201
        %v203 = vsel %vm202, 0.0, %v201
        %vm204 = vcmp.eq.f32.partialorder %v203, inf
        %v205 = vsel %vm204, 1.0, %v203
        %vm206 = vcmp.eq.f32.partialorder %v205, -inf
        %v207 = vsel %vm206, -1.0, %v205
        %208 = vst [vmem:[%s188] sm:$0x3] %v207
        %s209 = sand.u32 %s95, 1
        %s210 = scalar_lea.sflag [#allocation4], %s209
        %s211 = sand.u32 %s95, 1
        %s212 = smul.addr %s211, 2
        %s213 = scalar_lea.vmem [#allocation5], %s212
        // Predicated region
        $region33: #{tpu_custom_call.1} parent=27 // pred_check
          %p214 = pneg %p105
        $region34: #{tpu_custom_call.1} parent=27 // pred_check_branch
          %216 = sbr.rel (%p214) target = $region36
        $region35: #{tpu_custom_call.1} parent=27 // pred_region
          %s218 = ssub.s32 32, 32
          %219 = vsyncadd %s210, %s218
          %s220 = sadd.s32 %s24, %s23
          %s221 = smul.addr %s220, 32
          %s222 = scalar_lea.hbm %s2, %s221
          %s224 = sshll.u32 %s213, 4
          %s225 = int_to_ptr.vmem [resolvable:$true] %s224
          %227 = dma.vmem_to_hbm [thread:$0]  %s225, 32, %s222, %s210
        $region36: #{tpu_custom_call.1} parent=27 // pred_fallthru
          _
      $region28: #{tpu_custom_call.1} parent=5 // pred_fallthru
        _
      %p228 = scmp.le.s32.totalorder 2, %s14
      // Predicated region
      $region37: #{tpu_custom_call.1} parent=5 // pred_check
        %p229 = pneg %p228
      $region38: #{tpu_custom_call.1} parent=5 // pred_check_branch
        %231 = sbr.rel (%p229) target = $region40
      $region39: #{tpu_custom_call.1} parent=5 // pred_region
        %s232 = ssub.s32 %s14, 2
        // Predicated region
        $region41: #{tpu_custom_call.1} parent=39 // pred_check
          %p233 = pneg %p111
        $region42: #{tpu_custom_call.1} parent=39 // pred_check_branch
          %235 = sbr.rel (%p233) target = $region44
        $region43: #{tpu_custom_call.1} parent=39 // pred_region
          %s236 = sand.u32 %s96, 1
          %s237 = scalar_lea.sflag [#allocation4], %s236
          %s238 = sand.u32 %s96, 1
          %s239 = smul.addr %s238, 2
          %s240 = scalar_lea.vmem [#allocation5], %s239
          %241 = dma.done %s237, 32
        $region44: #{tpu_custom_call.1} parent=39 // pred_fallthru
          _
      $region40: #{tpu_custom_call.1} parent=5 // pred_fallthru
        _
    $region6: #{tpu_custom_call.1} parent=1 // loop_footer
      %s18 = sadd.s32 1, %s14
    $region7: #{tpu_custom_call.1} parent=1 // loop_footer_branch
      %13 = sbr.rel target = $region3
    $region8: #{tpu_custom_call.1} parent=1 // loop_exit
      _
    %242 = vsyncpa [#allocation3], 1
    %s243 = scalar_lea.sflag [#allocation3], 1
    %244 = vsyncpa %s243, 1
    %245 = vsyncpa [#allocation4], 1
    %s246 = scalar_lea.sflag [#allocation4], 1
    %247 = vsyncpa %s246, 1

</llo_original>
